<compile_context>
chip_gen: v7x
topology: tpu7x:2x2x1
jax: 0.10.0
libtpu: 0.0.40
codegen_flags: <defaults>
</compile_context>

<pallas_src>
import functools

import jax
import jax.numpy as jnp
from jax import lax
from jax.experimental import pallas as pl
from jax.experimental.pallas import tpu as pltpu


def _round_up(x, m):
    return (x + m - 1) // m * m


def _vmem_capacity_bytes():
    """Physical per-core VMEM (128 MiB on v5e/v6e, 64 MiB on v7x)."""
    try:
        return int(pltpu.get_tpu_info().vmem_capacity_bytes)
    except Exception:
        return 64 << 20          # conservative fallback (v7x per-TensorCore)


def _choose_channel_tiling(c, n, sub, tile_bytes, budget):
    """Largest channel tile under the VMEM budget that satisfies the (8,128)
    block rule (multiple of `sub`, or the full channel dim) and keeps >=2
    grid steps when the batch axis alone cannot feed both v7x TensorCores."""
    t_cap, t = 1, 1
    while t <= c and tile_bytes(t) <= budget:
        t_cap = t
        t += 1
    if n == 1 and c >= 2:
        t_cap = min(t_cap, max(1, c // 2))     # >=2 grid steps (v7x: 2 TCs)
    divisors = [t for t in range(1, t_cap + 1)
                if c % t == 0 and (t == c or t % sub == 0)]
    if divisors and (max(divisors) == c or 2 * max(divisors) >= t_cap):
        return max(divisors), c                # no channel padding needed
    # Awkward channel count: pad channels so the tile size is set by the VMEM
    # budget, not by divisibility (avoids the pathological c_tile=1 case).
    t = max(sub, (t_cap // sub) * sub)
    return t, _round_up(c, t)


def _unfold_kernel(x_ref, out_ref, xq_ref, *, kh, kw, h, w,
                   pad_t, pad_b, pad_l, base):
    # x_ref  : (1, C_TILE, h*w)         flattened input tile (lane-dense)
    # out_ref: (1, C_TILE, kh*kw, h*w)  im2col output tile (lane-dense)
    # xq_ref : (C_TILE, L)              flat staging buffer: the input lives
    #          at lanes [base, base + h*w); the vertical padding rows sit
    #          directly before/after it.  Horizontal padding is done by
    #          masking, so no horizontally-padded 2-D scratch is needed.
    c_tile = xq_ref.shape[0]
    hw = h * w
    dt = xq_ref.dtype

    # Border-only zeroing: only the vertical-pad row strips are ever read
    # unmasked; the interior is fully overwritten below, and the small
    # lead/tail slack lanes are always killed by the horizontal select.
    if pad_t:
        xq_ref[:, base - pad_t * w:base] = jnp.zeros((c_tile, pad_t * w), dt)
    if pad_b:
        xq_ref[:, base + hw:base + hw + pad_b * w] = (
            jnp.zeros((c_tile, pad_b * w), dt))

    # Interior: one lane-aligned dense store of the whole input tile.
    xq_ref[:, base:base + hw] = x_ref[0]

    # Column (position-in-row) index of every flattened output pixel.
    # Hoisted out of both loops (JAX does not CSE broadcasts/iotas).
    q_idx = lax.broadcasted_iota(jnp.int32, (1, hw), 1) % w

    # kh*kw shifted windows.  In flat coordinates window (ki, kj) is a pure
    # lane-offset slice of the staging buffer; the horizontal wrap at row
    # boundaries only depends on kj, so its mask is hoisted out of the ki
    # loop.  Stores go to the lane-dense (c_tile, h*w) output slab.
    for kj in range(kw):
        lo = max(0, pad_l - kj)
        hi = min(w, w + pad_l - kj)
        mask = None if (lo == 0 and hi == w) else ((q_idx >= lo) & (q_idx < hi))
        for ki in range(kh):
            off = base - pad_t * w - pad_l + ki * w + kj
            win = xq_ref[:, off:off + hw]
            if mask is not None:
                win = jnp.where(mask, win, 0)
            out_ref[0, :, ki * kw + kj, :] = win


def global_local_converter(x, local_size, *, c_tile=None):
    """Reproduces GlobalLocalConverter(local_size)(x) for a 4-D NCHW input."""
    kh, kw = local_size
    n, c, h, w = x.shape
    hw = h * w
    itemsize = jnp.dtype(x.dtype).itemsize
    sub = {4: 8, 2: 16, 1: 32}.get(itemsize, 8)   # dtype-aware sublane pack

    # PyTorch: padding = sum(([t-1-t//2, t//2] for t in local_size[::-1]), [])
    #   -> F.pad(X, [w_left, w_right, h_top, h_bottom])
    pad_l, pad_r = kw - 1 - kw // 2, kw // 2
    pad_t, pad_b = kh - 1 - kh // 2, kh // 2

    # Flat, vertically padded scratch layout: interior starts at the lane-
    # aligned offset `base`; total length covers the farthest window read.
    base = _round_up(pad_t * w + pad_l, 128)
    L = base + hw + pad_b * w + pad_r

    # Generation-aware VMEM budget (capped at ~48 MiB on v7x's 64 MiB cores,
    # ~96 MiB on v5e/v6e's 128 MiB), leaving ~30% headroom for compiler temps.
    cap = _vmem_capacity_bytes()
    vmem_limit = int(min(cap * 3 // 4, 96 << 20))
    buf_budget = int(vmem_limit * 0.7)

    def tile_bytes(t):
        hw_pad = _round_up(hw, 128)
        in_blk = _round_up(t, sub) * hw_pad * itemsize
        out_blk = t * _round_up(kh * kw, sub) * hw_pad * itemsize
        scratch = _round_up(t, sub) * _round_up(L, 128) * itemsize
        return 2 * (in_blk + out_blk) + scratch    # double-buffered blocks

    if c_tile is None:
        c_tile, c_work = _choose_channel_tiling(c, n, sub, tile_bytes,
                                                buf_budget)
    else:
        c_work = _round_up(c, c_tile)
    # TODO(synk): for extremely large h*w with tiny c an additional spatial
    # grid axis (with halo) would be needed; not required for backbone maps.

    x_flat = x.reshape(n, c, hw)                   # contiguous -> free
    if c_work != c:
        # Only hit for channel counts with no well-aligned divisor; costs one
        # extra pad/slice HBM pass but keeps blocks fat and aligned.
        x_flat = jnp.pad(x_flat, ((0, 0), (0, c_work - c), (0, 0)))

    kernel = functools.partial(_unfold_kernel, kh=kh, kw=kw, h=h, w=w,
                               pad_t=pad_t, pad_b=pad_b, pad_l=pad_l,
                               base=base)

    out = pl.pallas_call(
        kernel,
        out_shape=jax.ShapeDtypeStruct((n, c_work, kh * kw, hw), x.dtype),
        grid=(n, c_work // c_tile),
        in_specs=[pl.BlockSpec((1, c_tile, hw), lambda b, ct: (b, ct, 0))],
        out_specs=pl.BlockSpec((1, c_tile, kh * kw, hw),
                               lambda b, ct: (b, ct, 0, 0)),
        scratch_shapes=[pltpu.VMEM((c_tile, L), x.dtype)],
        compiler_params=pltpu.CompilerParams(
            dimension_semantics=("parallel", "parallel"),
            vmem_limit_bytes=vmem_limit,
        ),
        cost_estimate=pl.CostEstimate(
            flops=0, transcendentals=0,
            bytes_accessed=(1 + kh * kw) * n * c_work * hw * itemsize),
    )(x_flat)

    if c_work != c:
        out = out[:, :c]
    # Free, contiguous merge to the F.unfold layout: (n, c*kh*kw, h*w).
    return out.reshape(n, c * kh * kw, hw)


def _reference_unfold(x, local_size):
    """Pure-JAX reference matching F.pad + F.unfold semantics."""
    kh, kw = local_size
    n, c, h, w = x.shape
    pad_w = (kw - 1 - kw // 2, kw // 2)
    pad_h = (kh - 1 - kh // 2, kh // 2)
    xp = jnp.pad(x, ((0, 0), (0, 0), pad_h, pad_w))
    cols = []
    for ki in range(kh):
        for kj in range(kw):
            cols.append(xp[:, :, ki:ki + h, kj:kj + w])
    stacked = jnp.stack(cols, axis=2)          # (n, c, kh*kw, h, w)
    return stacked.reshape(n, c * kh * kw, h * w)


if __name__ == "__main__":
    local_size = (3, 3)          # module has no weights; just the window size
    n, c, h, w = 2, 4, 16, 16

    key = jax.random.PRNGKey(0)
    x = jax.random.normal(key, (n, c, h, w), dtype=jnp.float32)

    out = jax.block_until_ready(global_local_converter(x, local_size))

    ref = _reference_unfold(x, local_size)
    assert out.shape == (n, c * local_size[0] * local_size[1], h * w), out.shape
    assert jnp.allclose(out, ref), "Pallas unfold mismatch vs reference"

    print("KERNEL_OK")
</pallas_src>

<mosaic_0001>
module attributes {stable_mosaic.version = 11 : i64} {
  func.func @_unfold_kernel(%arg0: i32, %arg1: i32, %arg2: memref<1x4x256xf32, #tpu.memory_space<vmem>>, %arg3: memref<1x4x9x256xf32, #tpu.memory_space<vmem>>, %arg4: memref<4x401xf32, #tpu.memory_space<vmem>>) attributes {dimension_semantics = [#tpu.dimension_semantics<parallel>, #tpu.dimension_semantics<parallel>], iteration_bounds = array<i64: 2, 1>, scalar_prefetch = 0 : i64, scratch_operands = 1 : i64, tpu.core_type = #tpu.core_type<tc>, window_params = [{transform_indices = @transform_0, window_bounds = array<i64: 1, 4, 256>}, {transform_indices = @transform_1, window_bounds = array<i64: 1, 4, 9, 256>}]} {
    %cst = arith.constant 0.000000e+00 : f32
    %0 = vector.broadcast %cst : f32 to vector<4x16xf32>
    %c0 = arith.constant 0 : index
    %c112 = arith.constant 112 : index
    %1 = vector.load %arg4[%c0, %c112] : memref<4x401xf32, #tpu.memory_space<vmem>>, vector<4x16xf32>
    tpu.vector_store %arg4[%c0, %c112], %0 {strides = array<i32>} : memref<4x401xf32, #tpu.memory_space<vmem>>, vector<4x16xf32>,
    %cst_0 = arith.constant 0.000000e+00 : f32
    %2 = vector.broadcast %cst_0 : f32 to vector<4x16xf32>
    %c0_1 = arith.constant 0 : index
    %c384 = arith.constant 384 : index
    %3 = vector.load %arg4[%c0_1, %c384] : memref<4x401xf32, #tpu.memory_space<vmem>>, vector<4x16xf32>
    tpu.vector_store %arg4[%c0_1, %c384], %2 {strides = array<i32>} : memref<4x401xf32, #tpu.memory_space<vmem>>, vector<4x16xf32>,
    %c0_2 = arith.constant 0 : index
    %c0_3 = arith.constant 0 : index
    %c0_4 = arith.constant 0 : index
    %4 = vector.load %arg2[%c0_2, %c0_3, %c0_4] : memref<1x4x256xf32, #tpu.memory_space<vmem>>, vector<1x4x256xf32>
    %5 = vector.shape_cast %4 : vector<1x4x256xf32> to vector<4x256xf32>
    %c0_5 = arith.constant 0 : index
    %c128 = arith.constant 128 : index
    %6 = vector.load %arg4[%c0_5, %c128] : memref<4x401xf32, #tpu.memory_space<vmem>>, vector<4x256xf32>
    tpu.vector_store %arg4[%c0_5, %c128], %5 {strides = array<i32>} : memref<4x401xf32, #tpu.memory_space<vmem>>, vector<4x256xf32>,
    %7 = tpu.iota {dimensions = array<i32: 1>} : vector<1x256xi32>
    %c16_i32 = arith.constant 16 : i32
    %c0_i32 = arith.constant 0 : i32
    %8 = arith.cmpi eq, %c16_i32, %c0_i32 : i32
    %c1_i32 = arith.constant 1 : i32
    %9 = arith.select %8, %c1_i32, %c16_i32 : i32
    %10 = vector.broadcast %9 : i32 to vector<1x256xi32>
    %11 = arith.remsi %7, %10 : vector<1x256xi32>
    %c0_i32_6 = arith.constant 0 : i32
    %12 = vector.broadcast %c0_i32_6 : i32 to vector<1x256xi32>
    %13 = arith.cmpi ne, %11, %12 : vector<1x256xi32>
    %c0_i32_7 = arith.constant 0 : i32
    %14 = vector.broadcast %c0_i32_7 : i32 to vector<1x256xi32>
    %15 = arith.cmpi slt, %11, %14 : vector<1x256xi32>
    %c0_i32_8 = arith.constant 0 : i32
    %16 = arith.cmpi slt, %9, %c0_i32_8 : i32
    %17 = vector.broadcast %16 : i1 to vector<1x256xi1>
    %18 = vector.broadcast %17 : vector<1x256xi1> to vector<1x256xi1>
    %19 = arith.xori %15, %18 : vector<1x256xi1>
    %20 = arith.andi %19, %13 : vector<1x256xi1>
    %21 = vector.broadcast %9 : i32 to vector<1x256xi32>
    %22 = arith.addi %11, %21 : vector<1x256xi32>
    %23 = arith.select %20, %22, %11 : vector<1x256xi1>, vector<1x256xi32>
    %c1_i32_9 = arith.constant 1 : i32
    %24 = vector.broadcast %c1_i32_9 : i32 to vector<1x256xi32>
    %25 = arith.cmpi sge, %23, %24 : vector<1x256xi32>
    %c16_i32_10 = arith.constant 16 : i32
    %26 = vector.broadcast %c16_i32_10 : i32 to vector<1x256xi32>
    %27 = arith.cmpi slt, %23, %26 : vector<1x256xi32>
    %28 = arith.andi %25, %27 : vector<1x256xi1>
    %c0_11 = arith.constant 0 : index
    %c111 = arith.constant 111 : index
    %29 = vector.load %arg4[%c0_11, %c111] : memref<4x401xf32, #tpu.memory_space<vmem>>, vector<4x256xf32>
    %c0_i32_12 = arith.constant 0 : i32
    %30 = arith.sitofp %c0_i32_12 : i32 to f32
    %31 = vector.shape_cast %28 : vector<1x256xi1> to vector<1x256xi1>
    %32 = vector.broadcast %31 : vector<1x256xi1> to vector<4x256xi1>
    %33 = vector.broadcast %30 : f32 to vector<4x256xf32>
    %34 = arith.select %32, %29, %33 : vector<4x256xi1>, vector<4x256xf32>
    %c0_13 = arith.constant 0 : index
    %c0_14 = arith.constant 0 : index
    %c0_15 = arith.constant 0 : index
    %c0_16 = arith.constant 0 : index
    %35 = vector.load %arg3[%c0_13, %c0_14, %c0_15, %c0_16] : memref<1x4x9x256xf32, #tpu.memory_space<vmem>>, vector<1x4x1x256xf32>
    %36 = vector.shape_cast %35 : vector<1x4x1x256xf32> to vector<4x256xf32>
    %37 = vector.shape_cast %34 : vector<4x256xf32> to vector<1x4x1x256xf32>
    tpu.vector_store %arg3[%c0_13, %c0_14, %c0_15, %c0_16], %37 {strides = array<i32>} : memref<1x4x9x256xf32, #tpu.memory_space<vmem>>, vector<1x4x1x256xf32>,
    %c0_17 = arith.constant 0 : index
    %c127 = arith.constant 127 : index
    %38 = vector.load %arg4[%c0_17, %c127] : memref<4x401xf32, #tpu.memory_space<vmem>>, vector<4x256xf32>
    %c0_i32_18 = arith.constant 0 : i32
    %39 = arith.sitofp %c0_i32_18 : i32 to f32
    %40 = vector.shape_cast %28 : vector<1x256xi1> to vector<1x256xi1>
    %41 = vector.broadcast %40 : vector<1x256xi1> to vector<4x256xi1>
    %42 = vector.broadcast %39 : f32 to vector<4x256xf32>
    %43 = arith.select %41, %38, %42 : vector<4x256xi1>, vector<4x256xf32>
    %c0_19 = arith.constant 0 : index
    %c0_20 = arith.constant 0 : index
    %c3 = arith.constant 3 : index
    %c0_21 = arith.constant 0 : index
    %44 = vector.load %arg3[%c0_19, %c0_20, %c3, %c0_21] : memref<1x4x9x256xf32, #tpu.memory_space<vmem>>, vector<1x4x1x256xf32>
    %45 = vector.shape_cast %44 : vector<1x4x1x256xf32> to vector<4x256xf32>
    %46 = vector.shape_cast %43 : vector<4x256xf32> to vector<1x4x1x256xf32>
    tpu.vector_store %arg3[%c0_19, %c0_20, %c3, %c0_21], %46 {strides = array<i32>} : memref<1x4x9x256xf32, #tpu.memory_space<vmem>>, vector<1x4x1x256xf32>,
    %c0_22 = arith.constant 0 : index
    %c143 = arith.constant 143 : index
    %47 = vector.load %arg4[%c0_22, %c143] : memref<4x401xf32, #tpu.memory_space<vmem>>, vector<4x256xf32>
    %c0_i32_23 = arith.constant 0 : i32
    %48 = arith.sitofp %c0_i32_23 : i32 to f32
    %49 = vector.shape_cast %28 : vector<1x256xi1> to vector<1x256xi1>
    %50 = vector.broadcast %49 : vector<1x256xi1> to vector<4x256xi1>
    %51 = vector.broadcast %48 : f32 to vector<4x256xf32>
    %52 = arith.select %50, %47, %51 : vector<4x256xi1>, vector<4x256xf32>
    %c0_24 = arith.constant 0 : index
    %c0_25 = arith.constant 0 : index
    %c6 = arith.constant 6 : index
    %c0_26 = arith.constant 0 : index
    %53 = vector.load %arg3[%c0_24, %c0_25, %c6, %c0_26] : memref<1x4x9x256xf32, #tpu.memory_space<vmem>>, vector<1x4x1x256xf32>
    %54 = vector.shape_cast %53 : vector<1x4x1x256xf32> to vector<4x256xf32>
    %55 = vector.shape_cast %52 : vector<4x256xf32> to vector<1x4x1x256xf32>
    tpu.vector_store %arg3[%c0_24, %c0_25, %c6, %c0_26], %55 {strides = array<i32>} : memref<1x4x9x256xf32, #tpu.memory_space<vmem>>, vector<1x4x1x256xf32>,
    %c0_27 = arith.constant 0 : index
    %c112_28 = arith.constant 112 : index
    %56 = vector.load %arg4[%c0_27, %c112_28] : memref<4x401xf32, #tpu.memory_space<vmem>>, vector<4x256xf32>
    %c0_29 = arith.constant 0 : index
    %c0_30 = arith.constant 0 : index
    %c1 = arith.constant 1 : index
    %c0_31 = arith.constant 0 : index
    %57 = vector.load %arg3[%c0_29, %c0_30, %c1, %c0_31] : memref<1x4x9x256xf32, #tpu.memory_space<vmem>>, vector<1x4x1x256xf32>
    %58 = vector.shape_cast %57 : vector<1x4x1x256xf32> to vector<4x256xf32>
    %59 = vector.shape_cast %56 : vector<4x256xf32> to vector<1x4x1x256xf32>
    tpu.vector_store %arg3[%c0_29, %c0_30, %c1, %c0_31], %59 {strides = array<i32>} : memref<1x4x9x256xf32, #tpu.memory_space<vmem>>, vector<1x4x1x256xf32>,
    %c0_32 = arith.constant 0 : index
    %c128_33 = arith.constant 128 : index
    %60 = vector.load %arg4[%c0_32, %c128_33] : memref<4x401xf32, #tpu.memory_space<vmem>>, vector<4x256xf32>
    %c0_34 = arith.constant 0 : index
    %c0_35 = arith.constant 0 : index
    %c4 = arith.constant 4 : index
    %c0_36 = arith.constant 0 : index
    %61 = vector.load %arg3[%c0_34, %c0_35, %c4, %c0_36] : memref<1x4x9x256xf32, #tpu.memory_space<vmem>>, vector<1x4x1x256xf32>
    %62 = vector.shape_cast %61 : vector<1x4x1x256xf32> to vector<4x256xf32>
    %63 = vector.shape_cast %60 : vector<4x256xf32> to vector<1x4x1x256xf32>
    tpu.vector_store %arg3[%c0_34, %c0_35, %c4, %c0_36], %63 {strides = array<i32>} : memref<1x4x9x256xf32, #tpu.memory_space<vmem>>, vector<1x4x1x256xf32>,
    %c0_37 = arith.constant 0 : index
    %c144 = arith.constant 144 : index
    %64 = vector.load %arg4[%c0_37, %c144] : memref<4x401xf32, #tpu.memory_space<vmem>>, vector<4x256xf32>
    %c0_38 = arith.constant 0 : index
    %c0_39 = arith.constant 0 : index
    %c7 = arith.constant 7 : index
    %c0_40 = arith.constant 0 : index
    %65 = vector.load %arg3[%c0_38, %c0_39, %c7, %c0_40] : memref<1x4x9x256xf32, #tpu.memory_space<vmem>>, vector<1x4x1x256xf32>
    %66 = vector.shape_cast %65 : vector<1x4x1x256xf32> to vector<4x256xf32>
    %67 = vector.shape_cast %64 : vector<4x256xf32> to vector<1x4x1x256xf32>
    tpu.vector_store %arg3[%c0_38, %c0_39, %c7, %c0_40], %67 {strides = array<i32>} : memref<1x4x9x256xf32, #tpu.memory_space<vmem>>, vector<1x4x1x256xf32>,
    %c0_i32_41 = arith.constant 0 : i32
    %68 = vector.broadcast %c0_i32_41 : i32 to vector<1x256xi32>
    %69 = arith.cmpi sge, %23, %68 : vector<1x256xi32>
    %c15_i32 = arith.constant 15 : i32
    %70 = vector.broadcast %c15_i32 : i32 to vector<1x256xi32>
    %71 = arith.cmpi slt, %23, %70 : vector<1x256xi32>
    %72 = arith.andi %69, %71 : vector<1x256xi1>
    %c0_42 = arith.constant 0 : index
    %c113 = arith.constant 113 : index
    %73 = vector.load %arg4[%c0_42, %c113] : memref<4x401xf32, #tpu.memory_space<vmem>>, vector<4x256xf32>
    %c0_i32_43 = arith.constant 0 : i32
    %74 = arith.sitofp %c0_i32_43 : i32 to f32
    %75 = vector.shape_cast %72 : vector<1x256xi1> to vector<1x256xi1>
    %76 = vector.broadcast %75 : vector<1x256xi1> to vector<4x256xi1>
    %77 = vector.broadcast %74 : f32 to vector<4x256xf32>
    %78 = arith.select %76, %73, %77 : vector<4x256xi1>, vector<4x256xf32>
    %c0_44 = arith.constant 0 : index
    %c0_45 = arith.constant 0 : index
    %c2 = arith.constant 2 : index
    %c0_46 = arith.constant 0 : index
    %79 = vector.load %arg3[%c0_44, %c0_45, %c2, %c0_46] : memref<1x4x9x256xf32, #tpu.memory_space<vmem>>, vector<1x4x1x256xf32>
    %80 = vector.shape_cast %79 : vector<1x4x1x256xf32> to vector<4x256xf32>
    %81 = vector.shape_cast %78 : vector<4x256xf32> to vector<1x4x1x256xf32>
    tpu.vector_store %arg3[%c0_44, %c0_45, %c2, %c0_46], %81 {strides = array<i32>} : memref<1x4x9x256xf32, #tpu.memory_space<vmem>>, vector<1x4x1x256xf32>,
    %c0_47 = arith.constant 0 : index
    %c129 = arith.constant 129 : index
    %82 = vector.load %arg4[%c0_47, %c129] : memref<4x401xf32, #tpu.memory_space<vmem>>, vector<4x256xf32>
    %c0_i32_48 = arith.constant 0 : i32
    %83 = arith.sitofp %c0_i32_48 : i32 to f32
    %84 = vector.shape_cast %72 : vector<1x256xi1> to vector<1x256xi1>
    %85 = vector.broadcast %84 : vector<1x256xi1> to vector<4x256xi1>
    %86 = vector.broadcast %83 : f32 to vector<4x256xf32>
    %87 = arith.select %85, %82, %86 : vector<4x256xi1>, vector<4x256xf32>
    %c0_49 = arith.constant 0 : index
    %c0_50 = arith.constant 0 : index
    %c5 = arith.constant 5 : index
    %c0_51 = arith.constant 0 : index
    %88 = vector.load %arg3[%c0_49, %c0_50, %c5, %c0_51] : memref<1x4x9x256xf32, #tpu.memory_space<vmem>>, vector<1x4x1x256xf32>
    %89 = vector.shape_cast %88 : vector<1x4x1x256xf32> to vector<4x256xf32>
    %90 = vector.shape_cast %87 : vector<4x256xf32> to vector<1x4x1x256xf32>
    tpu.vector_store %arg3[%c0_49, %c0_50, %c5, %c0_51], %90 {strides = array<i32>} : memref<1x4x9x256xf32, #tpu.memory_space<vmem>>, vector<1x4x1x256xf32>,
    %c0_52 = arith.constant 0 : index
    %c145 = arith.constant 145 : index
    %91 = vector.load %arg4[%c0_52, %c145] : memref<4x401xf32, #tpu.memory_space<vmem>>, vector<4x256xf32>
    %c0_i32_53 = arith.constant 0 : i32
    %92 = arith.sitofp %c0_i32_53 : i32 to f32
    %93 = vector.shape_cast %72 : vector<1x256xi1> to vector<1x256xi1>
    %94 = vector.broadcast %93 : vector<1x256xi1> to vector<4x256xi1>
    %95 = vector.broadcast %92 : f32 to vector<4x256xf32>
    %96 = arith.select %94, %91, %95 : vector<4x256xi1>, vector<4x256xf32>
    %c0_54 = arith.constant 0 : index
    %c0_55 = arith.constant 0 : index
    %c8 = arith.constant 8 : index
    %c0_56 = arith.constant 0 : index
    %97 = vector.load %arg3[%c0_54, %c0_55, %c8, %c0_56] : memref<1x4x9x256xf32, #tpu.memory_space<vmem>>, vector<1x4x1x256xf32>
    %98 = vector.shape_cast %97 : vector<1x4x1x256xf32> to vector<4x256xf32>
    %99 = vector.shape_cast %96 : vector<4x256xf32> to vector<1x4x1x256xf32>
    tpu.vector_store %arg3[%c0_54, %c0_55, %c8, %c0_56], %99 {strides = array<i32>} : memref<1x4x9x256xf32, #tpu.memory_space<vmem>>, vector<1x4x1x256xf32>,
    return
  }
  func.func @transform_0(%arg0: i32, %arg1: i32) -> (i32, i32, i32) {
    %c0_i32 = arith.constant 0 : i32
    %c0_i32_0 = arith.constant 0 : i32
    return %arg0, %arg1, %c0_i32 : i32, i32, i32
  }
  func.func @transform_1(%arg0: i32, %arg1: i32) -> (i32, i32, i32, i32) {
    %c0_i32 = arith.constant 0 : i32
    %c0_i32_0 = arith.constant 0 : i32
    %c0_i32_1 = arith.constant 0 : i32
    return %arg0, %arg1, %c0_i32, %c0_i32_0 : i32, i32, i32, i32
  }
}

</mosaic_0001>

<llo_original>
// kernel: tpu_custom_call.1
$region0: #{tpu_custom_call.1}
  #allocation0 [shape = 'u32[]', space=smem, size = 0x4, offset = 0x4, fixed_abs, tag = 'smem constant byte address 0x4 - core index']
  #allocation1 [shape = 'u32[144,128]{1,0:T(1,128)}', space=vmem, size = 0x12000, scoped, tag = 'internal scratch']
  #allocation2 [shape = 'f32[4,401]{1,0:T(4,128)}', space=vmem, size = 0x2000, scoped, tag = 'scratch operand']
  %s0 = inlined_call_operand.hbm [shape: f32[2,4,256], index: 0, kind: input, shape index: {}]
  %s1 = inlined_call_operand.vmem [shape: f32[2,4,9,256], index: 1, kind: output, shape index: {}]
  %s2 = sld [smem:[#allocation0]]
  $region41: #{tpu_custom_call.1} parent=0
    _
  %s4 = ssub.s32 1, %s2
  %s5 = scalar_select 0, %s4, %s2
  $region1: #{tpu_custom_call.1} parent=0
    #allocation3 [shape = 'u8[8192]{0}', space=vmem, size = 0x2000, scoped, tag = 'input window, operand 0']
    #allocation4 [shape = 's32[2]{0}', space=sflag, size = 0x8, scoped, tag = 'scoped memory for tpu_custom_call.1']
    %6 = vsyncpa [#allocation4], 0
    %s7 = scalar_lea.sflag [#allocation4], 1
    %8 = vsyncpa %s7, 0
    loop: start=0, step=1, limit=4
    $region2: #{tpu_custom_call.1} parent=1 // loop_pre_header
      _
    $region3: #{tpu_custom_call.1} parent=1 // loop_header
      %s10 = sphi 0, %s14
      %p11 = scmp.ge.s32.totalorder %s10, 4
      %s17 = sphi 0, %s29
      %s18 = sphi 0, %s25
      %s19 = sphi 0, %s17
      %s20 = sphi 0, %s18
      %s21 = sphi 0, %s19
      %s22 = sphi 0, %s20
      %s34 = sphi 0, %s36
      %s37 = sphi 0, %s34
      %s38 = sphi 0, %s37
      %s54 = sphi 0, %s38
      %s62 = sphi 0, %s64
      %s65 = sphi 0, %s62
      %s66 = sphi 0, %s65
      %s82 = sphi 0, %s66
    $region4: #{tpu_custom_call.1} parent=1 // loop_header_branch
      %13 = sbr.rel (%p11) target = $region8
    $region5: #{tpu_custom_call.1} parent=1 // loop_body
      %s15 = ssub.s32 %s10, 1
      %s16 = ssub.s32 %s10, 2
      %s23 = sadd.s32 1, %s18
      %p24 = scmp.ge.s32.totalorder %s23, 1
      %s25 = scalar_select %p24, 0, %s23
      %s26 = sadd.s32 1, %s17
      %s27 = scalar_select %p24, %s26, %s17
      %p28 = scmp.ge.s32.totalorder %s27, 2
      %s29 = scalar_select %p28, 0, %s27
      %s30 = ssub.s32 %s17, %s29
      %s31 = ssub.s32 %s18, %s25
      %s32 = sor.u32 %s30, %s31
      %p33 = scmp.eq.s32.totalorder %s32, 0
      %s35 = sadd.s32 %s34, 1
      %s36 = scalar_select %p33, %s34, %s35
      %p39 = pneg %p33
      %p40 = scmp.eq.s32.totalorder %s10, 1
      %p41 = por %p39, %p40
      %p42 = scmp.ne.s32.totalorder %s34, %s37
      %p43 = scmp.eq.s32.totalorder %s10, 0
      %p44 = por %p42, %p43
      %p45 = scmp.ne.s32.totalorder %s34, %s37
      %p46 = scmp.eq.s32.totalorder %s15, 1
      %p47 = por %p45, %p46
      %p48 = scmp.ne.s32.totalorder %s37, %s38
      %p49 = scmp.eq.s32.totalorder %s15, 0
      %p50 = por %p48, %p49
      %p51 = scmp.ne.s32.totalorder %s37, %s38
      %p52 = scmp.eq.s32.totalorder %s16, 1
      %p53 = por %p51, %p52
      %p55 = scmp.ne.s32.totalorder %s38, %s54
      %p56 = scmp.eq.s32.totalorder %s16, 0
      %p57 = por %p55, %p56
      %s58 = ssub.s32 %s17, %s29
      %s59 = ssub.s32 %s18, %s25
      %s60 = sor.u32 %s58, %s59
      %p61 = scmp.eq.s32.totalorder %s60, 0
      %s63 = sadd.s32 %s62, 1
      %s64 = scalar_select %p61, %s62, %s63
      %p67 = pneg %p61
      %p68 = scmp.eq.s32.totalorder %s10, 1
      %p69 = por %p67, %p68
      %p70 = scmp.ne.s32.totalorder %s62, %s65
      %p71 = scmp.eq.s32.totalorder %s10, 0
      %p72 = por %p70, %p71
      %p73 = scmp.ne.s32.totalorder %s62, %s65
      %p74 = scmp.eq.s32.totalorder %s15, 1
      %p75 = por %p73, %p74
      %p76 = scmp.ne.s32.totalorder %s65, %s66
      %p77 = scmp.eq.s32.totalorder %s15, 0
      %p78 = por %p76, %p77
      %p79 = scmp.ne.s32.totalorder %s65, %s66
      %p80 = scmp.eq.s32.totalorder %s16, 1
      %p81 = por %p79, %p80
      %p83 = scmp.ne.s32.totalorder %s66, %s82
      %p84 = scmp.eq.s32.totalorder %s16, 0
      %p85 = por %p83, %p84
      %p86 = scmp.le.s32.totalorder 1, %s10
      %p87 = scmp.lt.s32.totalorder %s10, 3
      %p88 = pnand %p86, %p87
      %p89 = pneg %p88
      // Predicated region
      $region9: #{tpu_custom_call.1} parent=5 // pred_check
        _
      $region10: #{tpu_custom_call.1} parent=5 // pred_check_branch
        %91 = sbr.rel (%p88) target = $region12
      $region11: #{tpu_custom_call.1} parent=5 // pred_region
        %s92 = ssub.s32 %s10, 1
      $region12: #{tpu_custom_call.1} parent=5 // pred_fallthru
        _
      %p93 = scmp.lt.s32.totalorder %s10, 2
      // Predicated region
      $region13: #{tpu_custom_call.1} parent=5 // pred_check
        %p94 = pneg %p93
      $region14: #{tpu_custom_call.1} parent=5 // pred_check_branch
        %96 = sbr.rel (%p94) target = $region16
      $region15: #{tpu_custom_call.1} parent=5 // pred_region
        // Predicated region
        $region17: #{tpu_custom_call.1} parent=15 // pred_check
          %p97 = pneg %p44
        $region18: #{tpu_custom_call.1} parent=15 // pred_check_branch
          %99 = sbr.rel (%p97) target = $region20
        $region19: #{tpu_custom_call.1} parent=15 // pred_region
          %s100 = sand.u32 %s34, 1
          %s101 = scalar_lea.sflag [#allocation4], %s100
          %s102 = sand.u32 %s34, 1
          %s103 = smul.addr %s102, 8
          %s104 = scalar_lea.vmem [#allocation3], %s103
          %s106 = ssub.s32 128, 128
          %107 = vsyncadd %s101, %s106
          %s108 = smul.addr %s18, 2
          %s109 = smul.addr %s17, 2
          %s110 = sadd.s32 %s108, %s109
          %s111 = smul.addr %s110, 64
          %s112 = scalar_lea.hbm %s0, %s111
          %s114 = sshll.u32 %s104, 4
          %s115 = int_to_ptr.vmem [resolvable:$true] %s114
          %117 = dma.hbm_to_vmem [thread:$0]  %s112, 128, %s115, %s101
        $region20: #{tpu_custom_call.1} parent=15 // pred_fallthru
          _
      $region16: #{tpu_custom_call.1} parent=5 // pred_fallthru
        _
      %p118 = scmp.le.s32.totalorder 1, %s10
      %p119 = scmp.lt.s32.totalorder %s10, 3
      %p120 = pnand %p118, %p119
      %p121 = pneg %p120
      // Predicated region
      $region21: #{tpu_custom_call.1} parent=5 // pred_check
        _
      $region22: #{tpu_custom_call.1} parent=5 // pred_check_branch
        %123 = sbr.rel (%p120) target = $region24
      $region23: #{tpu_custom_call.1} parent=5 // pred_region
        %s124 = ssub.s32 %s10, 1
        %s125 = sand.u32 %s37, 1
        %s126 = scalar_lea.sflag [#allocation4], %s125
        %s127 = sand.u32 %s37, 1
        %s128 = smul.addr %s127, 8
        %s129 = scalar_lea.vmem [#allocation3], %s128
        // Predicated region
        $region25: #{tpu_custom_call.1} parent=23 // pred_check
          %p130 = pneg %p50
        $region26: #{tpu_custom_call.1} parent=23 // pred_check_branch
          %132 = sbr.rel (%p130) target = $region28
        $region27: #{tpu_custom_call.1} parent=23 // pred_region
          %133 = dma.done %s126, 128
        $region28: #{tpu_custom_call.1} parent=23 // pred_fallthru
          _
        %s134 = sand.u32 %s37, 1
        %s135 = scalar_lea.sflag [#allocation4], %s134
        %s136 = sand.u32 %s37, 1
        %s137 = smul.addr %s136, 8
        %s138 = scalar_lea.vmem [#allocation3], %s137
        %p139 = pneg %p50
        %p140 = pneg %p47
        %p141 = pneg %p78
        %p142 = pneg %p75
        %s143 = smul.u32 4, %s20
        %p144 = scmp.lt.s32.totalorder %s19, 1
        %s145 = scalar_select %p144, %s19, 1
        %p146 = scmp.lt.s32.totalorder %s143, 3
        %s147 = scalar_select %p146, %s143, 3
        %s148 = smul.addr %s147, 4
        %s149 = smul.addr %s145, 16
        %s150 = sadd.s32 %s148, %s149
        %s151 = smul.addr %s150, 8
        %s152 = scalar_lea.vmem %s1, %s151
        %s153 = smul.u32 4, %s20
        %p154 = scmp.lt.s32.totalorder %s19, 1
        %s155 = scalar_select %p154, %s19, 1
        %p156 = scmp.lt.s32.totalorder %s153, 3
        %s157 = scalar_select %p156, %s153, 3
        %s158 = smul.addr %s157, 4
        %s159 = smul.addr %s155, 16
        %s160 = sadd.s32 %s158, %s159
        %s161 = smul.addr %s160, 8
        %s162 = scalar_lea.vmem %s1, %s161
        %s163 = smul.u32 4, %s20
        %vm164 = vcmask 1044352
        %165 = vst.msk [vmem:[#allocation2] sm:$0xf] %vm164, 0.0
        %vm166 = vcmask 125952
        %167 = vst.msk [vmem:[#allocation2 + $0xc] sm:$0xf] %vm166, 0.0
        %v168 = vld [vmem:[%s129] sm:$0xff]
        %169 = vst [vmem:[#allocation2 + $0x4] sm:$0xff] %v168
        %v170 = vlaneseq
        %v171 = vand.u32 %v170, 127
        %v172 = vadd.s32 %v171, 128
        %vm173 = vcmp.lt.s32.totalorder %v171, 0
        %v174 = vsub.s32 0, %v171
        %v175 = vsel %vm173, %v174, %v171
        %v176 = vshrl.u32 %v175, 4
        %v177 = vand.u32 %v175, 15
        %v178 = vsub.s32 0, %v177
        %v179 = vsel %vm173, %v178, %v177
        %vm180 = vcmp.lt.s32.totalorder %v172, 0
        %v181 = vsub.s32 0, %v172
        %v182 = vsel %vm180, %v181, %v172
        %v183 = vshrl.u32 %v182, 4
        %v184 = vand.u32 %v182, 15
        %v185 = vsub.s32 0, %v184
        %v186 = vsel %vm180, %v185, %v184
        %vm187 = vcmp.ne.s32.totalorder %v179, 0
        %vm188 = vcmp.ne.s32.totalorder %v186, 0
        %vm189 = vcmp.lt.s32.totalorder %v179, 0
        %vm190 = vcmp.lt.s32.totalorder %v186, 0
        %vm191 = vmand %vm189, %vm187
        %vm192 = vmand %vm190, %vm188
        %v193 = vadd.s32 %v179, 16
        %v194 = vadd.s32 %v186, 16
        %v195 = vsel %vm191, %v193, %v179
        %v196 = vsel %vm192, %v194, %v186
        %vm197 = vcmp.ge.s32.totalorder %v195, 1
        %vm198 = vcmp.ge.s32.totalorder %v196, 1
        %vm199 = vcmp.lt.s32.totalorder %v195, 16
        %vm200 = vcmp.lt.s32.totalorder %v196, 16
        %vm201 = vmand %vm197, %vm199
        %vm202 = vmand %vm198, %vm200
        %v203 = vld [vmem:[#allocation2] sm:$0xff]
        %v204 = vld [vmem:[#allocation2 + $0x8] sm:$0xf]
        %v205 = vsel %vm201, 1, 0
        %v206 = vsel %vm202, 1, 0
        %vm207 = vcmp.eq.s32.totalorder %v205, 1
        %vm208 = vcmp.eq.s32.totalorder %v206, 1
        %v211 = vcombine.high %v203, %v203
        %212 = vrot.lane.b32.xlu0 %v203, 17
        %v213 = vpop.permute.xlu0 %212
        %214 = vrot.lane.b32.xlu0 %v211, 17
        %v215 = vpop.permute.xlu0 %214
        %216 = vrot.lane.b32.xlu0 %v204, 17
        %v217 = vpop.permute.xlu0 %216
        %vm218 = vcmask 138240
        %v219 = vsel %vm218, %v213, %v215
        %v220 = vsel %vm218, %v215, %v217
        %v223 = vsel %vm207, %v219, 0.0
        %v224 = vsel %vm208, %v220, 0.0
        %v227 = vcombine.low %v223, %v224
        %v229 = vunpack.c.l.s4 1966171168
        %v230 = vunpack.c.0.s8 %v229
        %v231 = vlaneseq
        %v232 = vshrl.u32 %v231, 7
        %v233 = vsub.s32 %v230, %v232
        %v234 = vrot.slane %v227, %v233
        %v235 = vcombine.high %v234, %v234
        %v237 = vunpack.c.l.s4 1966171168
        %v238 = vunpack.c.0.s8 %v237
        %v239 = vlaneseq
        %v240 = vshrl.u32 %v239, 7
        %v241 = vsub.s32 %v238, %v240
        %v242 = vrot.slane %v234, %v241
        %v244 = vunpack.c.l.s4 1966171168
        %v245 = vunpack.c.0.s8 %v244
        %v246 = vlaneseq
        %v247 = vshrl.u32 %v246, 7
        %v248 = vsub.s32 %v245, %v247
        %v249 = vrot.slane %v235, %v248
        %v250 = vcombine.high %v242, %v242
        %v251 = vcombine.high %v249, %v249
        %v256 = vlaneseq
        %vm257 = vcmp.ge.s32.totalorder %v256, 0
        %vm258 = vcmp.lt.s32.totalorder %v256, 256
        %vm259 = vmand %vm257, %vm258
        %260 = vst.msk [vmem:[%s162] ss:$8 sm:$0x3] %vm259, %v242
        %261 = vst.msk [vmem:[%s162] ss:$8 sm:$0x0] %vm259, %v242
        %s262 = scalar_lea.vmem %s162, 32
        %263 = vst.msk [vmem:[%s262] ss:$8 sm:$0x3] %vm259, %v249
        %264 = vst.msk [vmem:[%s262] ss:$8 sm:$0x0] %vm259, %v249
        %s265 = scalar_lea.vmem %s162, 64
        %266 = vst.msk [vmem:[%s265] ss:$8 sm:$0x3] %vm259, %v250
        %267 = vst.msk [vmem:[%s265] ss:$8 sm:$0x0] %vm259, %v250
        %s268 = scalar_lea.vmem %s162, 96
        %269 = vst.msk [vmem:[%s268] ss:$8 sm:$0x3] %vm259, %v251
        %270 = vst.msk [vmem:[%s268] ss:$8 sm:$0x0] %vm259, %v251
        %v271 = vld [vmem:[#allocation2] sm:$0xff]
        %v272 = vld [vmem:[#allocation2 + $0x8] sm:$0xf]
        %v275 = vcombine.high %v271, %v271
        %276 = vrot.lane.b32.xlu0 %v271, 1
        %v277 = vpop.permute.xlu0 %276
        %278 = vrot.lane.b32.xlu0 %v275, 1
        %v279 = vpop.permute.xlu0 %278
        %280 = vrot.lane.b32.xlu0 %v272, 1
        %v281 = vpop.permute.xlu0 %280
        %vm282 = vcmask 7168
        %v283 = vsel %vm282, %v277, %v279
        %v284 = vsel %vm282, %v279, %v281
        %v287 = vsel %vm207, %v283, 0.0
        %v288 = vsel %vm208, %v284, 0.0
        %v291 = vcombine.low %v287, %v288
        %v293 = vunpack.c.l.s4 1966171168
        %v294 = vunpack.c.0.s8 %v293
        %v295 = vlaneseq
        %v296 = vshrl.u32 %v295, 7
        %v297 = vsub.s32 %v294, %v296
        %v298 = vrot.slane %v291, %v297
        %v299 = vcombine.high %v298, %v298
        %v301 = vunpack.c.l.s4 1966171168
        %v302 = vunpack.c.0.s8 %v301
        %v303 = vlaneseq
        %v304 = vshrl.u32 %v303, 7
        %v305 = vsub.s32 %v302, %v304
        %v306 = vrot.slane %v298, %v305
        %v308 = vunpack.c.l.s4 1966171168
        %v309 = vunpack.c.0.s8 %v308
        %v310 = vlaneseq
        %v311 = vshrl.u32 %v310, 7
        %v312 = vsub.s32 %v309, %v311
        %v313 = vrot.slane %v299, %v312
        %v314 = vcombine.high %v306, %v306
        %v315 = vcombine.high %v313, %v313
        %s320 = scalar_lea.vmem %s162, 3
        %321 = vst.msk [vmem:[%s320] ss:$8 sm:$0x3] %vm259, %v306
        %322 = vst.msk [vmem:[%s320] ss:$8 sm:$0x0] %vm259, %v306
        %s323 = scalar_lea.vmem %s162, 35
        %324 = vst.msk [vmem:[%s323] ss:$8 sm:$0x3] %vm259, %v313
        %325 = vst.msk [vmem:[%s323] ss:$8 sm:$0x0] %vm259, %v313
        %s326 = scalar_lea.vmem %s162, 67
        %327 = vst.msk [vmem:[%s326] ss:$8 sm:$0x3] %vm259, %v314
        %328 = vst.msk [vmem:[%s326] ss:$8 sm:$0x0] %vm259, %v314
        %s329 = scalar_lea.vmem %s162, 99
        %330 = vst.msk [vmem:[%s329] ss:$8 sm:$0x3] %vm259, %v315
        %331 = vst.msk [vmem:[%s329] ss:$8 sm:$0x0] %vm259, %v315
        %v332 = vld [vmem:[#allocation2 + $0x4] sm:$0xff]
        %v333 = vld [vmem:[#allocation2 + $0xc] sm:$0xf]
        %v336 = vcombine.high %v332, %v332
        %337 = vrot.lane.b32.xlu0 %v332, 113
        %v338 = vpop.permute.xlu0 %337
        %339 = vrot.lane.b32.xlu0 %v336, 113
        %v340 = vpop.permute.xlu0 %339
        %341 = vrot.lane.b32.xlu0 %v333, 113
        %v342 = vpop.permute.xlu0 %341
        %vm343 = vcmask 924672
        %v344 = vsel %vm343, %v338, %v340
        %v345 = vsel %vm343, %v340, %v342
        %v348 = vsel %vm207, %v344, 0.0
        %v349 = vsel %vm208, %v345, 0.0
        %v352 = vcombine.low %v348, %v349
        %v354 = vunpack.c.l.s4 1966171168
        %v355 = vunpack.c.0.s8 %v354
        %v356 = vlaneseq
        %v357 = vshrl.u32 %v356, 7
        %v358 = vsub.s32 %v355, %v357
        %v359 = vrot.slane %v352, %v358
        %v360 = vcombine.high %v359, %v359
        %v362 = vunpack.c.l.s4 1966171168
        %v363 = vunpack.c.0.s8 %v362
        %v364 = vlaneseq
        %v365 = vshrl.u32 %v364, 7
        %v366 = vsub.s32 %v363, %v365
        %v367 = vrot.slane %v359, %v366
        %v369 = vunpack.c.l.s4 1966171168
        %v370 = vunpack.c.0.s8 %v369
        %v371 = vlaneseq
        %v372 = vshrl.u32 %v371, 7
        %v373 = vsub.s32 %v370, %v372
        %v374 = vrot.slane %v360, %v373
        %v375 = vcombine.high %v367, %v367
        %v376 = vcombine.high %v374, %v374
        %s381 = scalar_lea.vmem %s162, 6
        %382 = vst.msk [vmem:[%s381] ss:$8 sm:$0x3] %vm259, %v367
        %383 = vst.msk [vmem:[%s381] ss:$8 sm:$0x0] %vm259, %v367
        %s384 = scalar_lea.vmem %s162, 38
        %385 = vst.msk [vmem:[%s384] ss:$8 sm:$0x3] %vm259, %v374
        %386 = vst.msk [vmem:[%s384] ss:$8 sm:$0x0] %vm259, %v374
        %s387 = scalar_lea.vmem %s162, 70
        %388 = vst.msk [vmem:[%s387] ss:$8 sm:$0x3] %vm259, %v375
        %389 = vst.msk [vmem:[%s387] ss:$8 sm:$0x0] %vm259, %v375
        %s390 = scalar_lea.vmem %s162, 102
        %391 = vst.msk [vmem:[%s390] ss:$8 sm:$0x3] %vm259, %v376
        %392 = vst.msk [vmem:[%s390] ss:$8 sm:$0x0] %vm259, %v376
        %v393 = vld [vmem:[#allocation2] sm:$0xff]
        %v394 = vld [vmem:[#allocation2 + $0x8] sm:$0xf]
        %v398 = vunpack.c.l.s4 1966171168
        %v399 = vunpack.c.0.s8 %v398
        %v400 = vlaneseq
        %v401 = vshrl.u32 %v400, 7
        %v402 = vsub.s32 %v399, %v401
        %v403 = vrot.slane %v393, %v402
        %v405 = vunpack.c.l.s4 1966171168
        %v406 = vunpack.c.0.s8 %v405
        %v407 = vlaneseq
        %v408 = vshrl.u32 %v407, 7
        %v409 = vsub.s32 %v406, %v408
        %v410 = vrot.slane %v394, %v409
        %v411 = vcombine.low %v403, %v410
        %v412 = vcombine.high %v403, %v410
        %v414 = vunpack.c.l.s4 1966171168
        %v415 = vunpack.c.0.s8 %v414
        %v416 = vlaneseq
        %v417 = vshrl.u32 %v416, 7
        %v418 = vsub.s32 %v415, %v417
        %v419 = vrot.slane %v411, %v418
        %v421 = vunpack.c.l.s4 1966171168
        %v422 = vunpack.c.0.s8 %v421
        %v423 = vlaneseq
        %v424 = vshrl.u32 %v423, 7
        %v425 = vsub.s32 %v422, %v424
        %v426 = vrot.slane %v412, %v425
        %v427 = vcombine.high %v419, %v419
        %v428 = vcombine.high %v426, %v426
        %429 = vrot.lane.b32.xlu0 %v419, 16
        %v430 = vpop.permute.xlu0 %429
        %431 = vrot.lane.b32.xlu0 %v426, 16
        %v432 = vpop.permute.xlu0 %431
        %433 = vrot.lane.b32.xlu0 %v427, 16
        %v434 = vpop.permute.xlu0 %433
        %435 = vrot.lane.b32.xlu0 %v428, 16
        %v436 = vpop.permute.xlu0 %435
        %v437 = vrot.slane %v430, 1
        %v438 = vrot.slane %v432, 1
        %v439 = vrot.slane %v434, 1
        %v440 = vrot.slane %v436, 1
        %vm441 = vcmask 130048
        %v442 = vsel %vm441, %v430, %v437
        %v443 = vsel %vm441, %v432, %v438
        %v444 = vsel %vm441, %v434, %v439
        %v445 = vsel %vm441, %v436, %v440
        %s450 = scalar_lea.vmem %s162, 1
        %451 = vst.msk [vmem:[%s450] ss:$8 sm:$0x3] %vm259, %v442
        %452 = vst.msk [vmem:[%s450] ss:$8 sm:$0x0] %vm259, %v442
        %s453 = scalar_lea.vmem %s162, 33
        %454 = vst.msk [vmem:[%s453] ss:$8 sm:$0x3] %vm259, %v443
        %455 = vst.msk [vmem:[%s453] ss:$8 sm:$0x0] %vm259, %v443
        %s456 = scalar_lea.vmem %s162, 65
        %457 = vst.msk [vmem:[%s456] ss:$8 sm:$0x3] %vm259, %v444
        %458 = vst.msk [vmem:[%s456] ss:$8 sm:$0x0] %vm259, %v444
        %s459 = scalar_lea.vmem %s162, 97
        %460 = vst.msk [vmem:[%s459] ss:$8 sm:$0x3] %vm259, %v445
        %461 = vst.msk [vmem:[%s459] ss:$8 sm:$0x0] %vm259, %v445
        %v462 = vld [vmem:[#allocation2 + $0x4] sm:$0xff]
        %v465 = vunpack.c.l.s4 1966171168
        %v466 = vunpack.c.0.s8 %v465
        %v467 = vlaneseq
        %v468 = vshrl.u32 %v467, 7
        %v469 = vsub.s32 %v466, %v468
        %v470 = vrot.slane %v462, %v469
        %v471 = vcombine.high %v470, %v470
        %v473 = vunpack.c.l.s4 1966171168
        %v474 = vunpack.c.0.s8 %v473
        %v475 = vlaneseq
        %v476 = vshrl.u32 %v475, 7
        %v477 = vsub.s32 %v474, %v476
        %v478 = vrot.slane %v470, %v477
        %v480 = vunpack.c.l.s4 1966171168
        %v481 = vunpack.c.0.s8 %v480
        %v482 = vlaneseq
        %v483 = vshrl.u32 %v482, 7
        %v484 = vsub.s32 %v481, %v483
        %v485 = vrot.slane %v471, %v484
        %v486 = vcombine.high %v478, %v478
        %v487 = vcombine.high %v485, %v485
        %s492 = scalar_lea.vmem %s162, 4
        %493 = vst.msk [vmem:[%s492] ss:$8 sm:$0x3] %vm259, %v478
        %494 = vst.msk [vmem:[%s492] ss:$8 sm:$0x0] %vm259, %v478
        %s495 = scalar_lea.vmem %s162, 36
        %496 = vst.msk [vmem:[%s495] ss:$8 sm:$0x3] %vm259, %v485
        %497 = vst.msk [vmem:[%s495] ss:$8 sm:$0x0] %vm259, %v485
        %s498 = scalar_lea.vmem %s162, 68
        %499 = vst.msk [vmem:[%s498] ss:$8 sm:$0x3] %vm259, %v486
        %500 = vst.msk [vmem:[%s498] ss:$8 sm:$0x0] %vm259, %v486
        %s501 = scalar_lea.vmem %s162, 100
        %502 = vst.msk [vmem:[%s501] ss:$8 sm:$0x3] %vm259, %v487
        %503 = vst.msk [vmem:[%s501] ss:$8 sm:$0x0] %vm259, %v487
        %v504 = vld [vmem:[#allocation2 + $0x4] sm:$0xff]
        %v505 = vld [vmem:[#allocation2 + $0xc] sm:$0xf]
        %v509 = vunpack.c.l.s4 1966171168
        %v510 = vunpack.c.0.s8 %v509
        %v511 = vlaneseq
        %v512 = vshrl.u32 %v511, 7
        %v513 = vsub.s32 %v510, %v512
        %v514 = vrot.slane %v504, %v513
        %v516 = vunpack.c.l.s4 1966171168
        %v517 = vunpack.c.0.s8 %v516
        %v518 = vlaneseq
        %v519 = vshrl.u32 %v518, 7
        %v520 = vsub.s32 %v517, %v519
        %v521 = vrot.slane %v505, %v520
        %v522 = vcombine.low %v514, %v521
        %v523 = vcombine.high %v514, %v521
        %v525 = vunpack.c.l.s4 1966171168
        %v526 = vunpack.c.0.s8 %v525
        %v527 = vlaneseq
        %v528 = vshrl.u32 %v527, 7
        %v529 = vsub.s32 %v526, %v528
        %v530 = vrot.slane %v522, %v529
        %v532 = vunpack.c.l.s4 1966171168
        %v533 = vunpack.c.0.s8 %v532
        %v534 = vlaneseq
        %v535 = vshrl.u32 %v534, 7
        %v536 = vsub.s32 %v533, %v535
        %v537 = vrot.slane %v523, %v536
        %v538 = vcombine.high %v530, %v530
        %v539 = vcombine.high %v537, %v537
        %540 = vrot.lane.b32.xlu0 %v530, 112
        %v541 = vpop.permute.xlu0 %540
        %542 = vrot.lane.b32.xlu0 %v537, 112
        %v543 = vpop.permute.xlu0 %542
        %544 = vrot.lane.b32.xlu0 %v538, 112
        %v545 = vpop.permute.xlu0 %544
        %546 = vrot.lane.b32.xlu0 %v539, 112
        %v547 = vpop.permute.xlu0 %546
        %v548 = vrot.slane %v541, 1
        %v549 = vrot.slane %v543, 1
        %v550 = vrot.slane %v545, 1
        %v551 = vrot.slane %v547, 1
        %vm552 = vcmask 916480
        %v553 = vsel %vm552, %v541, %v548
        %v554 = vsel %vm552, %v543, %v549
        %v555 = vsel %vm552, %v545, %v550
        %v556 = vsel %vm552, %v547, %v551
        %s561 = scalar_lea.vmem %s162, 7
        %562 = vst.msk [vmem:[%s561] ss:$8 sm:$0x3] %vm259, %v553
        %563 = vst.msk [vmem:[%s561] ss:$8 sm:$0x0] %vm259, %v553
        %s564 = scalar_lea.vmem %s162, 39
        %565 = vst.msk [vmem:[%s564] ss:$8 sm:$0x3] %vm259, %v554
        %566 = vst.msk [vmem:[%s564] ss:$8 sm:$0x0] %vm259, %v554
        %s567 = scalar_lea.vmem %s162, 71
        %568 = vst.msk [vmem:[%s567] ss:$8 sm:$0x3] %vm259, %v555
        %569 = vst.msk [vmem:[%s567] ss:$8 sm:$0x0] %vm259, %v555
        %s570 = scalar_lea.vmem %s162, 103
        %571 = vst.msk [vmem:[%s570] ss:$8 sm:$0x3] %vm259, %v556
        %572 = vst.msk [vmem:[%s570] ss:$8 sm:$0x0] %vm259, %v556
        %vm573 = vcmp.ge.s32.totalorder %v195, 0
        %vm574 = vcmp.ge.s32.totalorder %v196, 0
        %vm575 = vcmp.lt.s32.totalorder %v195, 15
        %vm576 = vcmp.lt.s32.totalorder %v196, 15
        %vm577 = vmand %vm573, %vm575
        %vm578 = vmand %vm574, %vm576
        %v579 = vld [vmem:[#allocation2] sm:$0xff]
        %v580 = vld [vmem:[#allocation2 + $0x8] sm:$0xf]
        %v581 = vsel %vm577, 1, 0
        %v582 = vsel %vm578, 1, 0
        %vm583 = vcmp.eq.s32.totalorder %v581, 1
        %vm584 = vcmp.eq.s32.totalorder %v582, 1
        %v587 = vcombine.high %v579, %v579
        %588 = vrot.lane.b32.xlu0 %v579, 15
        %v589 = vpop.permute.xlu0 %588
        %590 = vrot.lane.b32.xlu0 %v587, 15
        %v591 = vpop.permute.xlu0 %590
        %592 = vrot.lane.b32.xlu0 %v580, 15
        %v593 = vpop.permute.xlu0 %592
        %vm594 = vcmask 121856
        %v595 = vsel %vm594, %v589, %v591
        %v596 = vsel %vm594, %v591, %v593
        %v599 = vsel %vm583, %v595, 0.0
        %v600 = vsel %vm584, %v596, 0.0
        %v603 = vcombine.low %v599, %v600
        %v605 = vunpack.c.l.s4 1966171168
        %v606 = vunpack.c.0.s8 %v605
        %v607 = vlaneseq
        %v608 = vshrl.u32 %v607, 7
        %v609 = vsub.s32 %v606, %v608
        %v610 = vrot.slane %v603, %v609
        %v611 = vcombine.high %v610, %v610
        %v613 = vunpack.c.l.s4 1966171168
        %v614 = vunpack.c.0.s8 %v613
        %v615 = vlaneseq
        %v616 = vshrl.u32 %v615, 7
        %v617 = vsub.s32 %v614, %v616
        %v618 = vrot.slane %v610, %v617
        %v620 = vunpack.c.l.s4 1966171168
        %v621 = vunpack.c.0.s8 %v620
        %v622 = vlaneseq
        %v623 = vshrl.u32 %v622, 7
        %v624 = vsub.s32 %v621, %v623
        %v625 = vrot.slane %v611, %v624
        %v626 = vcombine.high %v618, %v618
        %v627 = vcombine.high %v625, %v625
        %s632 = scalar_lea.vmem %s162, 2
        %633 = vst.msk [vmem:[%s632] ss:$8 sm:$0x3] %vm259, %v618
        %634 = vst.msk [vmem:[%s632] ss:$8 sm:$0x0] %vm259, %v618
        %s635 = scalar_lea.vmem %s162, 34
        %636 = vst.msk [vmem:[%s635] ss:$8 sm:$0x3] %vm259, %v625
        %637 = vst.msk [vmem:[%s635] ss:$8 sm:$0x0] %vm259, %v625
        %s638 = scalar_lea.vmem %s162, 66
        %639 = vst.msk [vmem:[%s638] ss:$8 sm:$0x3] %vm259, %v626
        %640 = vst.msk [vmem:[%s638] ss:$8 sm:$0x0] %vm259, %v626
        %s641 = scalar_lea.vmem %s162, 98
        %642 = vst.msk [vmem:[%s641] ss:$8 sm:$0x3] %vm259, %v627
        %643 = vst.msk [vmem:[%s641] ss:$8 sm:$0x0] %vm259, %v627
        %v644 = vld [vmem:[#allocation2 + $0x4] sm:$0xff]
        %v645 = vld [vmem:[#allocation2 + $0xc] sm:$0xf]
        %v648 = vcombine.high %v644, %v644
        %649 = vrot.lane.b32.xlu0 %v644, 127
        %v650 = vpop.permute.xlu0 %649
        %651 = vrot.lane.b32.xlu0 %v648, 127
        %v652 = vpop.permute.xlu0 %651
        %653 = vrot.lane.b32.xlu0 %v645, 127
        %v654 = vpop.permute.xlu0 %653
        %vm655 = vcmask 1039360
        %v656 = vsel %vm655, %v650, %v652
        %v657 = vsel %vm655, %v652, %v654
        %v660 = vsel %vm583, %v656, 0.0
        %v661 = vsel %vm584, %v657, 0.0
        %v664 = vcombine.low %v660, %v661
        %v666 = vunpack.c.l.s4 1966171168
        %v667 = vunpack.c.0.s8 %v666
        %v668 = vlaneseq
        %v669 = vshrl.u32 %v668, 7
        %v670 = vsub.s32 %v667, %v669
        %v671 = vrot.slane %v664, %v670
        %v672 = vcombine.high %v671, %v671
        %v674 = vunpack.c.l.s4 1966171168
        %v675 = vunpack.c.0.s8 %v674
        %v676 = vlaneseq
        %v677 = vshrl.u32 %v676, 7
        %v678 = vsub.s32 %v675, %v677
        %v679 = vrot.slane %v671, %v678
        %v681 = vunpack.c.l.s4 1966171168
        %v682 = vunpack.c.0.s8 %v681
        %v683 = vlaneseq
        %v684 = vshrl.u32 %v683, 7
        %v685 = vsub.s32 %v682, %v684
        %v686 = vrot.slane %v672, %v685
        %v687 = vcombine.high %v679, %v679
        %v688 = vcombine.high %v686, %v686
        %s693 = scalar_lea.vmem %s162, 5
        %694 = vst.msk [vmem:[%s693] ss:$8 sm:$0x3] %vm259, %v679
        %695 = vst.msk [vmem:[%s693] ss:$8 sm:$0x0] %vm259, %v679
        %s696 = scalar_lea.vmem %s162, 37
        %697 = vst.msk [vmem:[%s696] ss:$8 sm:$0x3] %vm259, %v686
        %698 = vst.msk [vmem:[%s696] ss:$8 sm:$0x0] %vm259, %v686
        %s699 = scalar_lea.vmem %s162, 69
        %700 = vst.msk [vmem:[%s699] ss:$8 sm:$0x3] %vm259, %v687
        %701 = vst.msk [vmem:[%s699] ss:$8 sm:$0x0] %vm259, %v687
        %s702 = scalar_lea.vmem %s162, 101
        %703 = vst.msk [vmem:[%s702] ss:$8 sm:$0x3] %vm259, %v688
        %704 = vst.msk [vmem:[%s702] ss:$8 sm:$0x0] %vm259, %v688
        %v705 = vld [vmem:[#allocation2 + $0x4] sm:$0xff]
        %v706 = vld [vmem:[#allocation2 + $0xc] sm:$0xf]
        %v709 = vcombine.high %v705, %v705
        %710 = vrot.lane.b32.xlu0 %v705, 111
        %v711 = vpop.permute.xlu0 %710
        %712 = vrot.lane.b32.xlu0 %v709, 111
        %v713 = vpop.permute.xlu0 %712
        %714 = vrot.lane.b32.xlu0 %v706, 111
        %v715 = vpop.permute.xlu0 %714
        %vm716 = vcmask 908288
        %v717 = vsel %vm716, %v711, %v713
        %v718 = vsel %vm716, %v713, %v715
        %v721 = vsel %vm583, %v717, 0.0
        %v722 = vsel %vm584, %v718, 0.0
        %v725 = vcombine.low %v721, %v722
        %v727 = vunpack.c.l.s4 1966171168
        %v728 = vunpack.c.0.s8 %v727
        %v729 = vlaneseq
        %v730 = vshrl.u32 %v729, 7
        %v731 = vsub.s32 %v728, %v730
        %v732 = vrot.slane %v725, %v731
        %v733 = vcombine.high %v732, %v732
        %v735 = vunpack.c.l.s4 1966171168
        %v736 = vunpack.c.0.s8 %v735
        %v737 = vlaneseq
        %v738 = vshrl.u32 %v737, 7
        %v739 = vsub.s32 %v736, %v738
        %v740 = vrot.slane %v732, %v739
        %v742 = vunpack.c.l.s4 1966171168
        %v743 = vunpack.c.0.s8 %v742
        %v744 = vlaneseq
        %v745 = vshrl.u32 %v744, 7
        %v746 = vsub.s32 %v743, %v745
        %v747 = vrot.slane %v733, %v746
        %v748 = vcombine.high %v740, %v740
        %v749 = vcombine.high %v747, %v747
        %s754 = scalar_lea.vmem %s162, 16
        %755 = vst.msk [vmem:[%s754] ss:$8 sm:$0x3] %vm259, %v740
        %756 = vst.msk [vmem:[%s754] ss:$8 sm:$0x0] %vm259, %v740
        %s757 = scalar_lea.vmem %s162, 48
        %758 = vst.msk [vmem:[%s757] ss:$8 sm:$0x3] %vm259, %v747
        %759 = vst.msk [vmem:[%s757] ss:$8 sm:$0x0] %vm259, %v747
        %s760 = scalar_lea.vmem %s162, 80
        %761 = vst.msk [vmem:[%s760] ss:$8 sm:$0x3] %vm259, %v748
        %762 = vst.msk [vmem:[%s760] ss:$8 sm:$0x0] %vm259, %v748
        %s763 = scalar_lea.vmem %s162, 112
        %764 = vst.msk [vmem:[%s763] ss:$8 sm:$0x3] %vm259, %v749
        %765 = vst.msk [vmem:[%s763] ss:$8 sm:$0x0] %vm259, %v749
        %s766 = smul.u32 4, %s20
        %p767 = scmp.lt.s32.totalorder %s19, 1
        %s768 = scalar_select %p767, %s19, 1
        %p769 = scmp.lt.s32.totalorder %s766, 3
        %s770 = scalar_select %p769, %s766, 3
        %s771 = smul.addr %s770, 4
        %s772 = smul.addr %s768, 16
        %s773 = sadd.s32 %s771, %s772
        %s774 = smul.addr %s773, 8
        %s775 = scalar_lea.vmem %s1, %s774
        // Predicated region
        $region29: #{tpu_custom_call.1} parent=23 // pred_check
          %p776 = pneg %p75
        $region30: #{tpu_custom_call.1} parent=23 // pred_check_branch
          %778 = sbr.rel (%p776) target = $region32
        $region31: #{tpu_custom_call.1} parent=23 // pred_region
          %s779 = smul.u32 4, %s20
        $region32: #{tpu_custom_call.1} parent=23 // pred_fallthru
          _
      $region24: #{tpu_custom_call.1} parent=5 // pred_fallthru
        _
      %p780 = scmp.le.s32.totalorder 2, %s10
      // Predicated region
      $region33: #{tpu_custom_call.1} parent=5 // pred_check
        %p781 = pneg %p780
      $region34: #{tpu_custom_call.1} parent=5 // pred_check_branch
        %783 = sbr.rel (%p781) target = $region36
      $region35: #{tpu_custom_call.1} parent=5 // pred_region
        %s784 = ssub.s32 %s10, 2
        // Predicated region
        $region37: #{tpu_custom_call.1} parent=35 // pred_check
          %p785 = pneg %p81
        $region38: #{tpu_custom_call.1} parent=35 // pred_check_branch
          %787 = sbr.rel (%p785) target = $region40
        $region39: #{tpu_custom_call.1} parent=35 // pred_region
          %s788 = smul.u32 4, %s22
          %p789 = scmp.lt.s32.totalorder %s21, 1
          %s790 = scalar_select %p789, %s21, 1
          %p791 = scmp.lt.s32.totalorder %s788, 3
          %s792 = scalar_select %p791, %s788, 3
          %s793 = smul.addr %s792, 4
          %s794 = smul.addr %s790, 16
          %s795 = sadd.s32 %s793, %s794
          %s796 = smul.addr %s795, 8
          %s797 = scalar_lea.vmem %s1, %s796
        $region40: #{tpu_custom_call.1} parent=35 // pred_fallthru
          _
      $region36: #{tpu_custom_call.1} parent=5 // pred_fallthru
        _
    $region6: #{tpu_custom_call.1} parent=1 // loop_footer
      %s14 = sadd.s32 1, %s10
    $region7: #{tpu_custom_call.1} parent=1 // loop_footer_branch
      %9 = sbr.rel target = $region3
    $region8: #{tpu_custom_call.1} parent=1 // loop_exit
      _
    %798 = vsyncpa [#allocation4], 1
    %s799 = scalar_lea.sflag [#allocation4], 1
    %800 = vsyncpa %s799, 1

</llo_original>
